<compile_context>
chip_gen: v5e
topology: v5e:2x2
jax: 0.10.0
libtpu: 0.0.40
codegen_flags: <defaults>
</compile_context>

<pallas_src>
import jax
import jax.numpy as jnp
import numpy as np
from jax.experimental import pallas as pl
from jax.experimental.pallas import tpu as pltpu


def _round_up(x, m):
    return (x + m - 1) // m * m


def _pick_tile_b(B, cap=512):
    """Largest multiple-of-128 tile <= cap that divides round_up(B, 128) while
    keeping the grid length >= 2 when possible (v7x has 2 TensorCores)."""
    n_blocks = _round_up(B, 128) // 128
    if n_blocks == 1:
        return 128
    best = 128
    for m in range(1, n_blocks // 2 + 1):          # G = n_blocks/m >= 2
        tile = m * 128
        if tile <= cap and n_blocks % m == 0:
            best = tile
    return best


def _reward_mlp_kernel(x_ref, w1_ref, b1_ref, w2_ref, b2_ref, w3_ref, b3_ref,
                       o_ref):
    # ---- layer 1 + ReLU: single fused K=(H+S) dot, bf16 MXU / f32 acc ------
    h1 = jnp.dot(x_ref[...], w1_ref[...], preferred_element_type=jnp.float32)
    h1 = jnp.maximum(h1 + b1_ref[...], 0.0)                     # (TILE_B, Lp) f32

    # ---- layer 2 + ReLU -----------------------------------------------------
    h2 = jnp.dot(h1.astype(w2_ref.dtype), w2_ref[...],
                 preferred_element_type=jnp.float32)
    h2 = jnp.maximum(h2 + b2_ref[...], 0.0)                     # (TILE_B, Lp) f32

    # ---- output layer (out_features = 1) ------------------------------------
    # VPU multiply + XLU transpose/reduce instead of a 1-column MXU pass,
    # in 128-row chunks so TILE_B up to 512+ doesn't spill the vreg file.
    w3 = w3_ref[...]                                            # (Lp, 1) f32
    b3 = b3_ref[...]                                            # (1, 1)  f32
    tile_b = h2.shape[0]
    for c in range(tile_b // 128):
        h2c = h2[c * 128:(c + 1) * 128, :]                      # (128, Lp)
        row = jnp.sum(h2c.T * w3, axis=0, keepdims=True) + b3   # (1, 128)
        # Lane-dense, unmasked store: broadcast across the 8 sublanes.
        o_ref[:, c * 128:(c + 1) * 128] = jnp.broadcast_to(
            row, (8, 128)).astype(o_ref.dtype)


def prepare_params(params, *, compute_dtype=jnp.bfloat16):
    """Pad layer_size to a lane-aligned multiple of 128 and cast the MXU
    weights to bf16.  Call ONCE at init (hoisted out of the forward path)."""
    w1, b1, w2, b2, w3, b3 = params
    L = w1.shape[1]
    Lp = _round_up(L, 128)
    dl = Lp - L
    w1p = jnp.pad(w1, ((0, 0), (0, dl))).astype(compute_dtype)   # (H+S, Lp)
    b1p = jnp.pad(b1, ((0, 0), (0, dl))).astype(jnp.float32)     # (1, Lp)
    w2p = jnp.pad(w2, ((0, dl), (0, dl))).astype(compute_dtype)  # (Lp, Lp)
    b2p = jnp.pad(b2, ((0, 0), (0, dl))).astype(jnp.float32)     # (1, Lp)
    w3p = jnp.pad(w3, ((0, dl), (0, 0))).astype(jnp.float32)     # (Lp, 1) VPU path
    b3p = b3.reshape(1, 1).astype(jnp.float32)                   # (1, 1)
    return (w1p, b1p, w2p, b2p, w3p, b3p)


def reward_model_forward(h, s, prepared_params, *, tile_b=None,
                         compute_dtype=jnp.bfloat16):
    """RewardModel forward. Returns (mean, scale) of Normal; mean is (B, 1)."""
    w1p, b1p, w2p, b2p, w3p, b3p = prepared_params
    B, H = h.shape
    S = s.shape[1]
    K = H + S
    assert w1p.shape[0] == K
    Lp = w1p.shape[1]

    # Fused layer-1 contraction: one (B, H+S) bf16 activation (cheap op; the
    # kernel then does one K=H+S dot instead of two K=H/K=S dots).
    x = jnp.concatenate((h, s), axis=1).astype(compute_dtype)

    TILE_B = tile_b if tile_b is not None else _pick_tile_b(B)
    assert TILE_B % 128 == 0, "tile_b must be a multiple of 128 (lane width)"
    B_pad = _round_up(B, TILE_B)
    if B_pad != B:
        x = jnp.pad(x, ((0, B_pad - B), (0, 0)))
    G = B_pad // TILE_B

    # Advisory cost hint so XLA overlaps this small custom call.
    flops = 2 * B_pad * (K * Lp + Lp * Lp + Lp)
    bytes_accessed = (
        x.size * x.dtype.itemsize
        + sum(int(a.size) * a.dtype.itemsize for a in prepared_params)
        + 8 * B_pad * 4)
    cost = pl.CostEstimate(flops=int(flops), transcendentals=0,
                           bytes_accessed=int(bytes_accessed))

    out_wide = pl.pallas_call(
        _reward_mlp_kernel,
        out_shape=jax.ShapeDtypeStruct((8, B_pad), jnp.float32),
        grid_spec=pltpu.PrefetchScalarGridSpec(
            num_scalar_prefetch=0,
            grid=(G,),
            in_specs=[
                pl.BlockSpec((TILE_B, K), lambda i: (i, 0)),   # x tile (pipelined)
                pl.BlockSpec((K, Lp), lambda i: (0, 0)),       # W1 (resident)
                pl.BlockSpec((1, Lp), lambda i: (0, 0)),       # b1 (resident)
                pl.BlockSpec((Lp, Lp), lambda i: (0, 0)),      # W2 (resident)
                pl.BlockSpec((1, Lp), lambda i: (0, 0)),       # b2 (resident)
                pl.BlockSpec((Lp, 1), lambda i: (0, 0)),       # w3 col (resident)
                pl.BlockSpec((1, 1), lambda i: (0, 0)),        # b3 (resident)
            ],
            out_specs=pl.BlockSpec((8, TILE_B), lambda i: (0, i)),  # lane-dense
        ),
        compiler_params=pltpu.CompilerParams(
            dimension_semantics=("parallel",)),
        cost_estimate=cost,
    )(x, w1p, b1p, w2p, b2p, w3p, b3p)

    # NOTE: raw out_wide rows [B:B_pad] are padding garbage; only row 0[:B]
    # is valid and is what we return.
    mean = out_wide[0, :B].reshape(B, 1).astype(h.dtype)
    scale = jnp.ones_like(mean)            # Normal(mean, 1)
    return mean, scale


def init_params(key, hidden_size, latent_size, layer_size, dtype=jnp.float32):
    """Deterministic init matching nn.Linear shapes (stored as [in, out])."""
    d_in = hidden_size + latent_size
    k1, k2, k3, k4, k5, k6 = jax.random.split(key, 6)

    def lin(kw, kb, fan_in, fan_out):
        bound = 1.0 / np.sqrt(fan_in)
        w = jax.random.uniform(kw, (fan_in, fan_out), dtype, -bound, bound)
        b = jax.random.uniform(kb, (1, fan_out), dtype, -bound, bound)
        return w, b

    w1, b1 = lin(k1, k2, d_in, layer_size)
    w2, b2 = lin(k3, k4, layer_size, layer_size)
    w3, b3 = lin(k5, k6, layer_size, 1)
    return (w1, b1, w2, b2, w3, b3)


def _reference_forward(h, s, params):
    w1, b1, w2, b2, w3, b3 = params
    hp = jax.lax.Precision.HIGHEST
    x = jnp.concatenate((h, s), axis=1)
    x = jnp.maximum(jnp.dot(x, w1, precision=hp) + b1, 0.0)
    x = jnp.maximum(jnp.dot(x, w2, precision=hp) + b2, 0.0)
    return jnp.dot(x, w3, precision=hp) + b3


if __name__ == "__main__":
    hidden_size, latent_size, layer_size = 32, 32, 64
    batch = 200   # not a multiple of 128: exercises batch padding + G=2 grid

    key = jax.random.PRNGKey(0)
    k_h, k_s, k_p = jax.random.split(key, 3)

    h = jax.random.normal(k_h, (batch, hidden_size), jnp.float32)
    s = jax.random.normal(k_s, (batch, latent_size), jnp.float32)
    params = init_params(k_p, hidden_size, latent_size, layer_size)
    prepared = prepare_params(params)       # pad + bf16-cast once, outside fwd

    fwd = jax.jit(reward_model_forward)
    mean, scale = fwd(h, s, prepared)
    mean = jax.block_until_ready(mean)
    scale = jax.block_until_ready(scale)

    ref = _reference_forward(h, s, params)
    # bf16 MXU operands (f32 accumulation) -> tolerance loosened vs the f32
    # HIGHEST-precision reference.
    np.testing.assert_allclose(np.asarray(mean), np.asarray(ref),
                               rtol=5e-2, atol=5e-2)
    assert mean.shape == (batch, 1) and scale.shape == (batch, 1)
    assert np.all(np.asarray(scale) == 1.0)

    print("KERNEL_OK")
</pallas_src>

<mosaic_0001>
module attributes {stable_mosaic.version = 11 : i64} {
  func.func @_reward_mlp_kernel(%arg0: i32, %arg1: memref<128x64xbf16, #tpu.memory_space<vmem>>, %arg2: memref<64x128xbf16, #tpu.memory_space<vmem>>, %arg3: memref<1x128xf32, #tpu.memory_space<vmem>>, %arg4: memref<128x128xbf16, #tpu.memory_space<vmem>>, %arg5: memref<1x128xf32, #tpu.memory_space<vmem>>, %arg6: memref<128x1xf32, #tpu.memory_space<vmem>>, %arg7: memref<1x1xf32, #tpu.memory_space<vmem>>, %arg8: memref<8x128xf32, #tpu.memory_space<vmem>>) attributes {dimension_semantics = [#tpu.dimension_semantics<parallel>], iteration_bounds = array<i64: 2>, scalar_prefetch = 0 : i64, scratch_operands = 0 : i64, tpu.core_type = #tpu.core_type<tc>, window_params = [{transform_indices = @transform_0, window_bounds = array<i64: 128, 64>}, {pipeline_mode = #tpu.pipeline_mode<synchronous>, transform_indices = @transform_1, window_bounds = array<i64: 64, 128>}, {pipeline_mode = #tpu.pipeline_mode<synchronous>, transform_indices = @transform_2, window_bounds = array<i64: 1, 128>}, {pipeline_mode = #tpu.pipeline_mode<synchronous>, transform_indices = @transform_3, window_bounds = array<i64: 128, 128>}, {pipeline_mode = #tpu.pipeline_mode<synchronous>, transform_indices = @transform_4, window_bounds = array<i64: 1, 128>}, {pipeline_mode = #tpu.pipeline_mode<synchronous>, transform_indices = @transform_5, window_bounds = array<i64: 128, 1>}, {pipeline_mode = #tpu.pipeline_mode<synchronous>, transform_indices = @transform_6, window_bounds = array<i64: 1, 1>}, {transform_indices = @transform_7, window_bounds = array<i64: 8, 128>}]} {
    %c0 = arith.constant 0 : index
    %c0_0 = arith.constant 0 : index
    %0 = vector.load %arg1[%c0, %c0_0] : memref<128x64xbf16, #tpu.memory_space<vmem>>, vector<128x64xbf16>
    %c0_1 = arith.constant 0 : index
    %c0_2 = arith.constant 0 : index
    %1 = vector.load %arg2[%c0_1, %c0_2] : memref<64x128xbf16, #tpu.memory_space<vmem>>, vector<64x128xbf16>
    %cst = arith.constant dense<0.000000e+00> : vector<128x128xf32>
    %2 = tpu.matmul %0, %1, %cst {dimension_numbers = #tpu.dot_dimension_numbers<[1], [0], [0], [1], [0, 0, 1, 1], [], []>} : vector<128x64xbf16>, vector<64x128xbf16>, vector<128x128xf32> -> vector<128x128xf32>
    %c0_3 = arith.constant 0 : index
    %c0_4 = arith.constant 0 : index
    %3 = vector.load %arg3[%c0_3, %c0_4] : memref<1x128xf32, #tpu.memory_space<vmem>>, vector<1x128xf32>
    %4 = vector.broadcast %3 : vector<1x128xf32> to vector<128x128xf32>
    %5 = arith.addf %2, %4 : vector<128x128xf32>
    %cst_5 = arith.constant 0.000000e+00 : f32
    %6 = vector.broadcast %cst_5 : f32 to vector<128x128xf32>
    %7 = arith.maximumf %5, %6 : vector<128x128xf32>
    %8 = arith.truncf %7 : vector<128x128xf32> to vector<128x128xbf16>
    %c0_6 = arith.constant 0 : index
    %c0_7 = arith.constant 0 : index
    %9 = vector.load %arg4[%c0_6, %c0_7] : memref<128x128xbf16, #tpu.memory_space<vmem>>, vector<128x128xbf16>
    %cst_8 = arith.constant dense<0.000000e+00> : vector<128x128xf32>
    %10 = tpu.matmul %8, %9, %cst_8 {dimension_numbers = #tpu.dot_dimension_numbers<[1], [0], [0], [1], [0, 0, 1, 1], [], []>} : vector<128x128xbf16>, vector<128x128xbf16>, vector<128x128xf32> -> vector<128x128xf32>
    %c0_9 = arith.constant 0 : index
    %c0_10 = arith.constant 0 : index
    %11 = vector.load %arg5[%c0_9, %c0_10] : memref<1x128xf32, #tpu.memory_space<vmem>>, vector<1x128xf32>
    %12 = vector.broadcast %11 : vector<1x128xf32> to vector<128x128xf32>
    %13 = arith.addf %10, %12 : vector<128x128xf32>
    %cst_11 = arith.constant 0.000000e+00 : f32
    %14 = vector.broadcast %cst_11 : f32 to vector<128x128xf32>
    %15 = arith.maximumf %13, %14 : vector<128x128xf32>
    %c0_12 = arith.constant 0 : index
    %c0_13 = arith.constant 0 : index
    %16 = vector.load %arg6[%c0_12, %c0_13] : memref<128x1xf32, #tpu.memory_space<vmem>>, vector<128x1xf32>
    %c0_14 = arith.constant 0 : index
    %c0_15 = arith.constant 0 : index
    %17 = vector.load %arg7[%c0_14, %c0_15] : memref<1x1xf32, #tpu.memory_space<vmem>>, vector<1x1xf32>
    %18 = tpu.transpose %15, [1, 0] : vector<128x128xf32> -> vector<128x128xf32>
    %19 = vector.broadcast %16 : vector<128x1xf32> to vector<128x128xf32>
    %20 = arith.mulf %18, %19 : vector<128x128xf32>
    %cst_16 = arith.constant dense<0.000000e+00> : vector<128xf32>
    %21 = vector.multi_reduction <add>, %20, %cst_16 [0] : vector<128x128xf32> to vector<128xf32>
    %22 = vector.shape_cast %21 : vector<128xf32> to vector<1x128xf32>
    %23 = vector.broadcast %17 : vector<1x1xf32> to vector<1x128xf32>
    %24 = arith.addf %22, %23 : vector<1x128xf32>
    %25 = vector.shape_cast %24 : vector<1x128xf32> to vector<1x128xf32>
    %26 = vector.broadcast %25 : vector<1x128xf32> to vector<8x128xf32>
    %c0_17 = arith.constant 0 : index
    %c0_18 = arith.constant 0 : index
    %27 = vector.load %arg8[%c0_17, %c0_18] : memref<8x128xf32, #tpu.memory_space<vmem>>, vector<8x128xf32>
    tpu.vector_store %arg8[%c0_17, %c0_18], %26 {strides = array<i32>} : memref<8x128xf32, #tpu.memory_space<vmem>>, vector<8x128xf32>,
    return
  }
  func.func @transform_0(%arg0: i32) -> (i32, i32) {
    %c0_i32 = arith.constant 0 : i32
    %c0_i32_0 = arith.constant 0 : i32
    return %arg0, %c0_i32 : i32, i32
  }
  func.func @transform_1(%arg0: i32) -> (i32, i32) {
    %c0_i32 = arith.constant 0 : i32
    %c0_i32_0 = arith.constant 0 : i32
    %c0_i32_1 = arith.constant 0 : i32
    return %c0_i32, %c0_i32_0 : i32, i32
  }
  func.func @transform_2(%arg0: i32) -> (i32, i32) {
    %c0_i32 = arith.constant 0 : i32
    %c0_i32_0 = arith.constant 0 : i32
    %c0_i32_1 = arith.constant 0 : i32
    return %c0_i32, %c0_i32_0 : i32, i32
  }
  func.func @transform_3(%arg0: i32) -> (i32, i32) {
    %c0_i32 = arith.constant 0 : i32
    %c0_i32_0 = arith.constant 0 : i32
    %c0_i32_1 = arith.constant 0 : i32
    return %c0_i32, %c0_i32_0 : i32, i32
  }
  func.func @transform_4(%arg0: i32) -> (i32, i32) {
    %c0_i32 = arith.constant 0 : i32
    %c0_i32_0 = arith.constant 0 : i32
    %c0_i32_1 = arith.constant 0 : i32
    return %c0_i32, %c0_i32_0 : i32, i32
  }
  func.func @transform_5(%arg0: i32) -> (i32, i32) {
    %c0_i32 = arith.constant 0 : i32
    %c0_i32_0 = arith.constant 0 : i32
    %c0_i32_1 = arith.constant 0 : i32
    return %c0_i32, %c0_i32_0 : i32, i32
  }
  func.func @transform_6(%arg0: i32) -> (i32, i32) {
    %c0_i32 = arith.constant 0 : i32
    %c0_i32_0 = arith.constant 0 : i32
    %c0_i32_1 = arith.constant 0 : i32
    return %c0_i32, %c0_i32_0 : i32, i32
  }
  func.func @transform_7(%arg0: i32) -> (i32, i32) {
    %c0_i32 = arith.constant 0 : i32
    %c0_i32_0 = arith.constant 0 : i32
    return %c0_i32, %arg0 : i32, i32
  }
}

</mosaic_0001>

<llo_original>
// kernel: reward_model_forward.1
$region0: #{reward_model_forward.1}
  #allocation0 [shape = 'u32[]', space=smem, size = 0x4, offset = 0x4, fixed_abs, tag = 'smem constant byte address 0x4 - core index']
  #allocation1 [shape = 'u32[72,128]{1,0:T(1,128)}', space=vmem, size = 0x9000, scoped, tag = 'internal scratch']
  #allocation2 [shape = 'f32[1,1]{1,0:T(1,128)S(1)}', space=vmem, size = 0x200, scoped, tag = 'scoped memory for reward_model_forward.1']
  %s0 = inlined_call_operand.vmem [shape: bf16[256,64], index: 0, kind: input, shape index: {}]
  %s1 = inlined_call_operand.vmem [shape: bf16[64,128], index: 1, kind: input, shape index: {}]
  %s2 = inlined_call_operand.vmem [shape: f32[1,128], index: 2, kind: input, shape index: {}]
  %s3 = inlined_call_operand.vmem [shape: bf16[128,128], index: 3, kind: input, shape index: {}]
  %s4 = inlined_call_operand.vmem [shape: f32[1,128], index: 4, kind: input, shape index: {}]
  %s5 = inlined_call_operand.vmem [shape: f32[128,1], index: 5, kind: input, shape index: {}]
  %s6 = inlined_call_operand.<no memory space> [shape: f32[1,1], index: 6, kind: input, shape index: {}]
  %s7 = inlined_call_operand.vmem [shape: f32[8,256], index: 7, kind: output, shape index: {}]
  %s8 = sld [smem:[#allocation0]]
  $region61: #{reward_model_forward.1} parent=0
    _
  %s10 = ssub.s32 1, %s8
  %s11 = scalar_select 0, %s10, %s8
  %v12 = vstv %s6
  %13 = vst [vmem:[#allocation2] sm:$0x1] %v12
  loop: start=0, step=1, limit=4
  $region2: #{reward_model_forward.1} parent=0 // loop_pre_header
    _
  $region3: #{reward_model_forward.1} parent=0 // loop_header
    %s15 = sphi 0, %s19
    %p16 = scmp.ge.s32.totalorder %s15, 4
    %s25 = sphi 0, %s27
    %s28 = sphi 0, %s25
    %s29 = sphi 0, %s28
    %s45 = sphi 0, %s29
    %s49 = sphi 0, %s49
    %s51 = sphi 0, %s49
    %s52 = sphi 0, %s51
    %s66 = sphi 0, %s52
    %s70 = sphi 0, %s70
    %s72 = sphi 0, %s70
    %s73 = sphi 0, %s72
    %s87 = sphi 0, %s73
    %s91 = sphi 0, %s91
    %s93 = sphi 0, %s91
    %s94 = sphi 0, %s93
    %s108 = sphi 0, %s94
    %s112 = sphi 0, %s112
    %s114 = sphi 0, %s112
    %s115 = sphi 0, %s114
    %s129 = sphi 0, %s115
    %s133 = sphi 0, %s133
    %s135 = sphi 0, %s133
    %s136 = sphi 0, %s135
    %s150 = sphi 0, %s136
    %s154 = sphi 0, %s154
    %s156 = sphi 0, %s154
    %s157 = sphi 0, %s156
    %s171 = sphi 0, %s157
    %s177 = sphi 0, %s179
    %s180 = sphi 0, %s177
    %s181 = sphi 0, %s180
    %s197 = sphi 0, %s181
  $region4: #{reward_model_forward.1} parent=0 // loop_header_branch
    %18 = sbr.rel (%p16) target = $region8
  $region5: #{reward_model_forward.1} parent=0 // loop_body
    %s20 = ssub.s32 %s15, 1
    %s21 = ssub.s32 %s15, 2
    %s22 = sadd.s32 %s15, 1
    %s23 = ssub.s32 %s15, %s22
    %p24 = scmp.eq.s32.totalorder %s23, 0
    %s26 = sadd.s32 %s25, 1
    %s27 = scalar_select %p24, %s25, %s26
    %p30 = pneg %p24
    %p31 = scmp.eq.s32.totalorder %s15, 1
    %p32 = por %p30, %p31
    %p33 = scmp.ne.s32.totalorder %s25, %s28
    %p34 = scmp.eq.s32.totalorder %s15, 0
    %p35 = por %p33, %p34
    %p36 = scmp.ne.s32.totalorder %s25, %s28
    %p37 = scmp.eq.s32.totalorder %s20, 1
    %p38 = por %p36, %p37
    %p39 = scmp.ne.s32.totalorder %s28, %s29
    %p40 = scmp.eq.s32.totalorder %s20, 0
    %p41 = por %p39, %p40
    %p42 = scmp.ne.s32.totalorder %s28, %s29
    %p43 = scmp.eq.s32.totalorder %s21, 1
    %p44 = por %p42, %p43
    %p46 = scmp.ne.s32.totalorder %s29, %s45
    %p47 = scmp.eq.s32.totalorder %s21, 0
    %p48 = por %p46, %p47
    %s50 = sadd.s32 %s49, 1
    %p53 = scmp.eq.s32.totalorder %s15, 1
    %p54 = scmp.ne.s32.totalorder %s49, %s51
    %p55 = scmp.eq.s32.totalorder %s15, 0
    %p56 = por %p54, %p55
    %p57 = scmp.ne.s32.totalorder %s49, %s51
    %p58 = scmp.eq.s32.totalorder %s20, 1
    %p59 = por %p57, %p58
    %p60 = scmp.ne.s32.totalorder %s51, %s52
    %p61 = scmp.eq.s32.totalorder %s20, 0
    %p62 = por %p60, %p61
    %p63 = scmp.ne.s32.totalorder %s51, %s52
    %p64 = scmp.eq.s32.totalorder %s21, 1
    %p65 = por %p63, %p64
    %p67 = scmp.ne.s32.totalorder %s52, %s66
    %p68 = scmp.eq.s32.totalorder %s21, 0
    %p69 = por %p67, %p68
    %s71 = sadd.s32 %s70, 1
    %p74 = scmp.eq.s32.totalorder %s15, 1
    %p75 = scmp.ne.s32.totalorder %s70, %s72
    %p76 = scmp.eq.s32.totalorder %s15, 0
    %p77 = por %p75, %p76
    %p78 = scmp.ne.s32.totalorder %s70, %s72
    %p79 = scmp.eq.s32.totalorder %s20, 1
    %p80 = por %p78, %p79
    %p81 = scmp.ne.s32.totalorder %s72, %s73
    %p82 = scmp.eq.s32.totalorder %s20, 0
    %p83 = por %p81, %p82
    %p84 = scmp.ne.s32.totalorder %s72, %s73
    %p85 = scmp.eq.s32.totalorder %s21, 1
    %p86 = por %p84, %p85
    %p88 = scmp.ne.s32.totalorder %s73, %s87
    %p89 = scmp.eq.s32.totalorder %s21, 0
    %p90 = por %p88, %p89
    %s92 = sadd.s32 %s91, 1
    %p95 = scmp.eq.s32.totalorder %s15, 1
    %p96 = scmp.ne.s32.totalorder %s91, %s93
    %p97 = scmp.eq.s32.totalorder %s15, 0
    %p98 = por %p96, %p97
    %p99 = scmp.ne.s32.totalorder %s91, %s93
    %p100 = scmp.eq.s32.totalorder %s20, 1
    %p101 = por %p99, %p100
    %p102 = scmp.ne.s32.totalorder %s93, %s94
    %p103 = scmp.eq.s32.totalorder %s20, 0
    %p104 = por %p102, %p103
    %p105 = scmp.ne.s32.totalorder %s93, %s94
    %p106 = scmp.eq.s32.totalorder %s21, 1
    %p107 = por %p105, %p106
    %p109 = scmp.ne.s32.totalorder %s94, %s108
    %p110 = scmp.eq.s32.totalorder %s21, 0
    %p111 = por %p109, %p110
    %s113 = sadd.s32 %s112, 1
    %p116 = scmp.eq.s32.totalorder %s15, 1
    %p117 = scmp.ne.s32.totalorder %s112, %s114
    %p118 = scmp.eq.s32.totalorder %s15, 0
    %p119 = por %p117, %p118
    %p120 = scmp.ne.s32.totalorder %s112, %s114
    %p121 = scmp.eq.s32.totalorder %s20, 1
    %p122 = por %p120, %p121
    %p123 = scmp.ne.s32.totalorder %s114, %s115
    %p124 = scmp.eq.s32.totalorder %s20, 0
    %p125 = por %p123, %p124
    %p126 = scmp.ne.s32.totalorder %s114, %s115
    %p127 = scmp.eq.s32.totalorder %s21, 1
    %p128 = por %p126, %p127
    %p130 = scmp.ne.s32.totalorder %s115, %s129
    %p131 = scmp.eq.s32.totalorder %s21, 0
    %p132 = por %p130, %p131
    %s134 = sadd.s32 %s133, 1
    %p137 = scmp.eq.s32.totalorder %s15, 1
    %p138 = scmp.ne.s32.totalorder %s133, %s135
    %p139 = scmp.eq.s32.totalorder %s15, 0
    %p140 = por %p138, %p139
    %p141 = scmp.ne.s32.totalorder %s133, %s135
    %p142 = scmp.eq.s32.totalorder %s20, 1
    %p143 = por %p141, %p142
    %p144 = scmp.ne.s32.totalorder %s135, %s136
    %p145 = scmp.eq.s32.totalorder %s20, 0
    %p146 = por %p144, %p145
    %p147 = scmp.ne.s32.totalorder %s135, %s136
    %p148 = scmp.eq.s32.totalorder %s21, 1
    %p149 = por %p147, %p148
    %p151 = scmp.ne.s32.totalorder %s136, %s150
    %p152 = scmp.eq.s32.totalorder %s21, 0
    %p153 = por %p151, %p152
    %s155 = sadd.s32 %s154, 1
    %p158 = scmp.eq.s32.totalorder %s15, 1
    %p159 = scmp.ne.s32.totalorder %s154, %s156
    %p160 = scmp.eq.s32.totalorder %s15, 0
    %p161 = por %p159, %p160
    %p162 = scmp.ne.s32.totalorder %s154, %s156
    %p163 = scmp.eq.s32.totalorder %s20, 1
    %p164 = por %p162, %p163
    %p165 = scmp.ne.s32.totalorder %s156, %s157
    %p166 = scmp.eq.s32.totalorder %s20, 0
    %p167 = por %p165, %p166
    %p168 = scmp.ne.s32.totalorder %s156, %s157
    %p169 = scmp.eq.s32.totalorder %s21, 1
    %p170 = por %p168, %p169
    %p172 = scmp.ne.s32.totalorder %s157, %s171
    %p173 = scmp.eq.s32.totalorder %s21, 0
    %p174 = por %p172, %p173
    %s175 = ssub.s32 %s15, %s22
    %p176 = scmp.eq.s32.totalorder %s175, 0
    %s178 = sadd.s32 %s177, 1
    %s179 = scalar_select %p176, %s177, %s178
    %p182 = pneg %p176
    %p183 = scmp.eq.s32.totalorder %s15, 1
    %p184 = por %p182, %p183
    %p185 = scmp.ne.s32.totalorder %s177, %s180
    %p186 = scmp.eq.s32.totalorder %s15, 0
    %p187 = por %p185, %p186
    %p188 = scmp.ne.s32.totalorder %s177, %s180
    %p189 = scmp.eq.s32.totalorder %s20, 1
    %p190 = por %p188, %p189
    %p191 = scmp.ne.s32.totalorder %s180, %s181
    %p192 = scmp.eq.s32.totalorder %s20, 0
    %p193 = por %p191, %p192
    %p194 = scmp.ne.s32.totalorder %s180, %s181
    %p195 = scmp.eq.s32.totalorder %s21, 1
    %p196 = por %p194, %p195
    %p198 = scmp.ne.s32.totalorder %s181, %s197
    %p199 = scmp.eq.s32.totalorder %s21, 0
    %p200 = por %p198, %p199
    %p201 = scmp.le.s32.totalorder 1, %s15
    %p202 = scmp.lt.s32.totalorder %s15, 3
    %p203 = pnand %p201, %p202
    %p204 = pneg %p203
    // Predicated region
    $region9: #{reward_model_forward.1} parent=5 // pred_check
      _
    $region10: #{reward_model_forward.1} parent=5 // pred_check_branch
      %206 = sbr.rel (%p203) target = $region12
    $region11: #{reward_model_forward.1} parent=5 // pred_region
      %s207 = ssub.s32 %s15, 1
      // Predicated region
      $region13: #{reward_model_forward.1} parent=11 // pred_check
        %p208 = pneg %p62
      $region14: #{reward_model_forward.1} parent=11 // pred_check_branch
        %210 = sbr.rel (%p208) target = $region16
      $region15: #{reward_model_forward.1} parent=11 // pred_region
        _
      $region16: #{reward_model_forward.1} parent=11 // pred_fallthru
        _
      // Predicated region
      $region17: #{reward_model_forward.1} parent=11 // pred_check
        %p211 = pneg %p83
      $region18: #{reward_model_forward.1} parent=11 // pred_check_branch
        %213 = sbr.rel (%p211) target = $region20
      $region19: #{reward_model_forward.1} parent=11 // pred_region
        _
      $region20: #{reward_model_forward.1} parent=11 // pred_fallthru
        _
      // Predicated region
      $region21: #{reward_model_forward.1} parent=11 // pred_check
        %p214 = pneg %p104
      $region22: #{reward_model_forward.1} parent=11 // pred_check_branch
        %216 = sbr.rel (%p214) target = $region24
      $region23: #{reward_model_forward.1} parent=11 // pred_region
        _
      $region24: #{reward_model_forward.1} parent=11 // pred_fallthru
        _
      // Predicated region
      $region25: #{reward_model_forward.1} parent=11 // pred_check
        %p217 = pneg %p125
      $region26: #{reward_model_forward.1} parent=11 // pred_check_branch
        %219 = sbr.rel (%p217) target = $region28
      $region27: #{reward_model_forward.1} parent=11 // pred_region
        _
      $region28: #{reward_model_forward.1} parent=11 // pred_fallthru
        _
      // Predicated region
      $region29: #{reward_model_forward.1} parent=11 // pred_check
        %p220 = pneg %p146
      $region30: #{reward_model_forward.1} parent=11 // pred_check_branch
        %222 = sbr.rel (%p220) target = $region32
      $region31: #{reward_model_forward.1} parent=11 // pred_region
        _
      $region32: #{reward_model_forward.1} parent=11 // pred_fallthru
        _
      // Predicated region
      $region33: #{reward_model_forward.1} parent=11 // pred_check
        %p223 = pneg %p167
      $region34: #{reward_model_forward.1} parent=11 // pred_check_branch
        %225 = sbr.rel (%p223) target = $region36
      $region35: #{reward_model_forward.1} parent=11 // pred_region
        _
      $region36: #{reward_model_forward.1} parent=11 // pred_fallthru
        _
    $region12: #{reward_model_forward.1} parent=5 // pred_fallthru
      _
    %p226 = scmp.lt.s32.totalorder %s15, 2
    // Predicated region
    $region37: #{reward_model_forward.1} parent=5 // pred_check
      %p227 = pneg %p226
    $region38: #{reward_model_forward.1} parent=5 // pred_check_branch
      %229 = sbr.rel (%p227) target = $region40
    $region39: #{reward_model_forward.1} parent=5 // pred_region
      // Predicated region
      $region41: #{reward_model_forward.1} parent=39 // pred_check
        %p230 = pneg %p35
      $region42: #{reward_model_forward.1} parent=39 // pred_check_branch
        %232 = sbr.rel (%p230) target = $region44
      $region43: #{reward_model_forward.1} parent=39 // pred_region
        %s233 = smul.u32 16, %s15
        %p234 = scmp.lt.s32.totalorder %s233, 31
        %s235 = scalar_select %p234, %s233, 31
        %s236 = smul.addr %s235, 4
        %s237 = scalar_lea.vmem %s0, %s236
        %s238 = smul.u32 16, %s15
      $region44: #{reward_model_forward.1} parent=39 // pred_fallthru
        _
    $region40: #{reward_model_forward.1} parent=5 // pred_fallthru
      _
    %p239 = scmp.le.s32.totalorder 1, %s15
    %p240 = scmp.lt.s32.totalorder %s15, 3
    %p241 = pnand %p239, %p240
    %p242 = pneg %p241
    // Predicated region
    $region45: #{reward_model_forward.1} parent=5 // pred_check
      _
    $region46: #{reward_model_forward.1} parent=5 // pred_check_branch
      %244 = sbr.rel (%p241) target = $region48
    $region47: #{reward_model_forward.1} parent=5 // pred_region
      %s245 = ssub.s32 %s15, 1
      %s246 = smul.u32 16, %s20
      %p247 = scmp.lt.s32.totalorder %s246, 31
      %s248 = scalar_select %p247, %s246, 31
      %s249 = smul.addr %s248, 4
      %s250 = scalar_lea.vmem %s0, %s249
      %p251 = pneg %p41
      %p252 = pneg %p38
      %p253 = pneg %p62
      %p254 = pneg %p59
      %p255 = pneg %p83
      %p256 = pneg %p80
      %p257 = pneg %p104
      %p258 = pneg %p101
      %p259 = pneg %p125
      %p260 = pneg %p122
      %p261 = pneg %p146
      %p262 = pneg %p143
      %p263 = pneg %p167
      %p264 = pneg %p164
      %p265 = pneg %p193
      %p266 = pneg %p190
      %p267 = scmp.lt.s32.totalorder %s20, 1
      %s268 = scalar_select %p267, %s20, 1
      %s269 = smul.addr %s268, 8
      %s270 = scalar_lea.vmem %s7, %s269
      %s271 = smul.u32 16, %s20
      %p272 = scmp.lt.s32.totalorder %s271, 31
      %s273 = scalar_select %p272, %s271, 31
      %s274 = smul.addr %s273, 4
      %s275 = scalar_lea.vmem %s0, %s274
      %s276 = smul.u32 16, %s20
      %p277 = scmp.lt.s32.totalorder %s20, 1
      %s278 = scalar_select %p277, %s20, 1
      %s279 = smul.addr %s278, 8
      %s280 = scalar_lea.vmem %s7, %s279
      %v282 = vld [vmem:[%s275] sm:$0xf]
      %v283 = vld [vmem:[%s275 + $0x4] sm:$0xf]
      %v284 = vld [vmem:[%s275 + $0x8] sm:$0xf]
      %v285 = vld [vmem:[%s275 + $0xc] sm:$0xf]
      %v286 = vld [vmem:[%s275 + $0x10] sm:$0xf]
      %v287 = vld [vmem:[%s275 + $0x14] sm:$0xf]
      %v288 = vld [vmem:[%s275 + $0x18] sm:$0xf]
      %v289 = vld [vmem:[%s275 + $0x1c] sm:$0xf]
      %v290 = vld [vmem:[%s275 + $0x20] sm:$0xf]
      %v291 = vld [vmem:[%s275 + $0x24] sm:$0xf]
      %v292 = vld [vmem:[%s275 + $0x28] sm:$0xf]
      %v293 = vld [vmem:[%s275 + $0x2c] sm:$0xf]
      %v294 = vld [vmem:[%s275 + $0x30] sm:$0xf]
      %v295 = vld [vmem:[%s275 + $0x34] sm:$0xf]
      %v296 = vld [vmem:[%s275 + $0x38] sm:$0xf]
      %v297 = vld [vmem:[%s275 + $0x3c] sm:$0xf]
      %v298 = vld [vmem:[%s1] sm:$0xf]
      %v299 = vld [vmem:[%s1 + $0x4] sm:$0xf]
      %v300 = vld [vmem:[%s1 + $0x8] sm:$0xf]
      %v301 = vld [vmem:[%s1 + $0xc] sm:$0xf]
      %v302 = vld [vmem:[%s1 + $0x10] sm:$0xf]
      %v303 = vld [vmem:[%s1 + $0x14] sm:$0xf]
      %v304 = vld [vmem:[%s1 + $0x18] sm:$0xf]
      %v305 = vld [vmem:[%s1 + $0x1c] sm:$0xf]
      %v306 = vld [vmem:[%s2] sm:$0x1]
      %v308 = vperm.slane %v306, 0
      %v326 = vunpack.c.l.b16 %v282
      %v327 = vunpack.c.l.b16 %v283
      %v328 = vunpack.c.l.b16 %v284
      %v329 = vunpack.c.l.b16 %v285
      %v330 = vunpack.c.l.b16 %v286
      %v331 = vunpack.c.l.b16 %v287
      %v332 = vunpack.c.l.b16 %v288
      %v333 = vunpack.c.l.b16 %v289
      %v334 = vunpack.c.l.b16 %v290
      %v335 = vunpack.c.l.b16 %v291
      %v336 = vunpack.c.l.b16 %v292
      %v337 = vunpack.c.l.b16 %v293
      %v338 = vunpack.c.l.b16 %v294
      %v339 = vunpack.c.l.b16 %v295
      %v340 = vunpack.c.l.b16 %v296
      %v341 = vunpack.c.l.b16 %v297
      %v342 = vpack.c.b16 %v327, %v326
      %v343 = vpack.c.b16 %v329, %v328
      %v344 = vpack.c.b16 %v331, %v330
      %v345 = vpack.c.b16 %v333, %v332
      %v346 = vpack.c.b16 %v335, %v334
      %v347 = vpack.c.b16 %v337, %v336
      %v348 = vpack.c.b16 %v339, %v338
      %v349 = vpack.c.b16 %v341, %v340
      %v358 = vunpack.c.l.b16 %v298
      %v359 = vunpack.c.l.b16 %v299
      %v360 = vunpack.c.l.b16 %v300
      %v361 = vunpack.c.l.b16 %v301
      %v362 = vunpack.c.l.b16 %v302
      %v363 = vunpack.c.l.b16 %v303
      %v364 = vunpack.c.l.b16 %v304
      %v365 = vunpack.c.l.b16 %v305
      %v366 = vpack.c.b16 %v359, %v358
      %v367 = vpack.c.b16 %v361, %v360
      %v368 = vpack.c.b16 %v363, %v362
      %v369 = vpack.c.b16 %v365, %v364
      %vm374 = vcmask 523264
      %v376 = vsel %vm374, %v342, 0
      %v379 = vsel %vm374, %v343, 0
      %v382 = vsel %vm374, %v344, 0
      %v385 = vsel %vm374, %v345, 0
      %v388 = vsel %vm374, %v346, 0
      %v391 = vsel %vm374, %v347, 0
      %v394 = vsel %vm374, %v348, 0
      %v397 = vsel %vm374, %v349, 0
      %399 = vmatpush.bf16.msra.mxu0 0
      %400 = vmatpush.bf16.msra.mxu0 0
      %401 = vmatpush.bf16.msra.mxu0 0
      %402 = vmatpush.bf16.msra.mxu0 0
      %403 = vmatpush.bf16.msra.mxu0 %v369
      %404 = vmatpush.bf16.msra.mxu0 %v368
      %405 = vmatpush.bf16.msra.mxu0 %v367
      %406 = vmatpush.bf16.msra.mxu0 %v366
      %407 = vmatmul.bf16.gmra.mxu0 %v376
      %v408 = vpop.f32.mrf.mxu0
      %v409 = vadd.f32 %v308, %v408
      %v410 = vpop.f32.mrf.mxu0
      %v411 = vadd.f32 %v308, %v410
      %412 = vmatmul.bf16.gmra.mxu0 %v379
      %v413 = vpop.f32.mrf.mxu0
      %v414 = vadd.f32 %v308, %v413
      %v415 = vpop.f32.mrf.mxu0
      %v416 = vadd.f32 %v308, %v415
      %417 = vmatmul.bf16.gmra.mxu0 %v382
      %v418 = vpop.f32.mrf.mxu0
      %v419 = vadd.f32 %v308, %v418
      %v420 = vpop.f32.mrf.mxu0
      %v421 = vadd.f32 %v308, %v420
      %422 = vmatmul.bf16.gmra.mxu0 %v385
      %v423 = vpop.f32.mrf.mxu0
      %v424 = vadd.f32 %v308, %v423
      %v425 = vpop.f32.mrf.mxu0
      %v426 = vadd.f32 %v308, %v425
      %427 = vmatmul.bf16.gmra.mxu0 %v388
      %v428 = vpop.f32.mrf.mxu0
      %v429 = vadd.f32 %v308, %v428
      %v430 = vpop.f32.mrf.mxu0
      %v431 = vadd.f32 %v308, %v430
      %432 = vmatmul.bf16.gmra.mxu0 %v391
      %v433 = vpop.f32.mrf.mxu0
      %v434 = vadd.f32 %v308, %v433
      %v435 = vpop.f32.mrf.mxu0
      %v436 = vadd.f32 %v308, %v435
      %437 = vmatmul.bf16.gmra.mxu0 %v394
      %v438 = vpop.f32.mrf.mxu0
      %v439 = vadd.f32 %v308, %v438
      %v440 = vpop.f32.mrf.mxu0
      %v441 = vadd.f32 %v308, %v440
      %442 = vmatmul.bf16.gmra.mxu0 %v397
      %v443 = vpop.f32.mrf.mxu0
      %v444 = vadd.f32 %v308, %v443
      %v445 = vpop.f32.mrf.mxu0
      %v446 = vadd.f32 %v308, %v445
      %447 = vdwg.mxu0
      %v448 = vmax.f32 %v409, 0.0
      %v449 = vmax.f32 %v411, 0.0
      %v450 = vmax.f32 %v414, 0.0
      %v451 = vmax.f32 %v416, 0.0
      %v452 = vmax.f32 %v419, 0.0
      %v453 = vmax.f32 %v421, 0.0
      %v454 = vmax.f32 %v424, 0.0
      %v455 = vmax.f32 %v426, 0.0
      %v456 = vmax.f32 %v429, 0.0
      %v457 = vmax.f32 %v431, 0.0
      %v458 = vmax.f32 %v434, 0.0
      %v459 = vmax.f32 %v436, 0.0
      %v460 = vmax.f32 %v439, 0.0
      %v461 = vmax.f32 %v441, 0.0
      %v462 = vmax.f32 %v444, 0.0
      %v463 = vmax.f32 %v446, 0.0
      %v464 = vpack.c.bf16 %v449, %v448
      %v465 = vpack.c.bf16 %v451, %v450
      %v466 = vpack.c.bf16 %v453, %v452
      %v467 = vpack.c.bf16 %v455, %v454
      %v468 = vpack.c.bf16 %v457, %v456
      %v469 = vpack.c.bf16 %v459, %v458
      %v470 = vpack.c.bf16 %v461, %v460
      %v471 = vpack.c.bf16 %v463, %v462
      %v472 = vld [vmem:[%s3] sm:$0xf]
      %v473 = vld [vmem:[%s3 + $0x4] sm:$0xf]
      %v474 = vld [vmem:[%s3 + $0x8] sm:$0xf]
      %v475 = vld [vmem:[%s3 + $0xc] sm:$0xf]
      %v476 = vld [vmem:[%s3 + $0x10] sm:$0xf]
      %v477 = vld [vmem:[%s3 + $0x14] sm:$0xf]
      %v478 = vld [vmem:[%s3 + $0x18] sm:$0xf]
      %v479 = vld [vmem:[%s3 + $0x1c] sm:$0xf]
      %v480 = vld [vmem:[%s3 + $0x20] sm:$0xf]
      %v481 = vld [vmem:[%s3 + $0x24] sm:$0xf]
      %v482 = vld [vmem:[%s3 + $0x28] sm:$0xf]
      %v483 = vld [vmem:[%s3 + $0x2c] sm:$0xf]
      %v484 = vld [vmem:[%s3 + $0x30] sm:$0xf]
      %v485 = vld [vmem:[%s3 + $0x34] sm:$0xf]
      %v486 = vld [vmem:[%s3 + $0x38] sm:$0xf]
      %v487 = vld [vmem:[%s3 + $0x3c] sm:$0xf]
      %v488 = vld [vmem:[%s4] sm:$0x1]
      %v490 = vperm.slane %v488, 0
      %v508 = vunpack.c.l.b16 %v472
      %v509 = vunpack.c.l.b16 %v473
      %v510 = vunpack.c.l.b16 %v474
      %v511 = vunpack.c.l.b16 %v475
      %v512 = vunpack.c.l.b16 %v476
      %v513 = vunpack.c.l.b16 %v477
      %v514 = vunpack.c.l.b16 %v478
      %v515 = vunpack.c.l.b16 %v479
      %v516 = vunpack.c.l.b16 %v480
      %v517 = vunpack.c.l.b16 %v481
      %v518 = vunpack.c.l.b16 %v482
      %v519 = vunpack.c.l.b16 %v483
      %v520 = vunpack.c.l.b16 %v484
      %v521 = vunpack.c.l.b16 %v485
      %v522 = vunpack.c.l.b16 %v486
      %v523 = vunpack.c.l.b16 %v487
      %v524 = vpack.c.b16 %v509, %v508
      %v525 = vpack.c.b16 %v511, %v510
      %v526 = vpack.c.b16 %v513, %v512
      %v527 = vpack.c.b16 %v515, %v514
      %v528 = vpack.c.b16 %v517, %v516
      %v529 = vpack.c.b16 %v519, %v518
      %v530 = vpack.c.b16 %v521, %v520
      %v531 = vpack.c.b16 %v523, %v522
      %540 = vmatpush.bf16.msra.mxu0 %v531
      %541 = vmatpush.bf16.msra.mxu0 %v530
      %542 = vmatpush.bf16.msra.mxu0 %v529
      %543 = vmatpush.bf16.msra.mxu0 %v528
      %544 = vmatpush.bf16.msra.mxu0 %v527
      %545 = vmatpush.bf16.msra.mxu0 %v526
      %546 = vmatpush.bf16.msra.mxu0 %v525
      %547 = vmatpush.bf16.msra.mxu0 %v524
      %548 = vmatmul.bf16.gmra.mxu0 %v464
      %v549 = vpop.f32.mrf.mxu0
      %v550 = vadd.f32 %v490, %v549
      %v551 = vpop.f32.mrf.mxu0
      %v552 = vadd.f32 %v490, %v551
      %553 = vmatmul.bf16.gmra.mxu0 %v465
      %v554 = vpop.f32.mrf.mxu0
      %v555 = vadd.f32 %v490, %v554
      %v556 = vpop.f32.mrf.mxu0
      %v557 = vadd.f32 %v490, %v556
      %558 = vmatmul.bf16.gmra.mxu0 %v466
      %v559 = vpop.f32.mrf.mxu0
      %v560 = vadd.f32 %v490, %v559
      %v561 = vpop.f32.mrf.mxu0
      %v562 = vadd.f32 %v490, %v561
      %563 = vmatmul.bf16.gmra.mxu0 %v467
      %v564 = vpop.f32.mrf.mxu0
      %v565 = vadd.f32 %v490, %v564
      %v566 = vpop.f32.mrf.mxu0
      %v567 = vadd.f32 %v490, %v566
      %568 = vmatmul.bf16.gmra.mxu0 %v468
      %v569 = vpop.f32.mrf.mxu0
      %v570 = vadd.f32 %v490, %v569
      %v571 = vpop.f32.mrf.mxu0
      %v572 = vadd.f32 %v490, %v571
      %573 = vmatmul.bf16.gmra.mxu0 %v469
      %v574 = vpop.f32.mrf.mxu0
      %v575 = vadd.f32 %v490, %v574
      %v576 = vpop.f32.mrf.mxu0
      %v577 = vadd.f32 %v490, %v576
      %578 = vmatmul.bf16.gmra.mxu0 %v470
      %v579 = vpop.f32.mrf.mxu0
      %v580 = vadd.f32 %v490, %v579
      %v581 = vpop.f32.mrf.mxu0
      %v582 = vadd.f32 %v490, %v581
      %583 = vmatmul.bf16.gmra.mxu0 %v471
      %v584 = vpop.f32.mrf.mxu0
      %v585 = vadd.f32 %v490, %v584
      %v586 = vpop.f32.mrf.mxu0
      %v587 = vadd.f32 %v490, %v586
      %588 = vdwg.mxu0
      %v589 = vmax.f32 %v550, 0.0
      %v590 = vmax.f32 %v552, 0.0
      %v591 = vmax.f32 %v555, 0.0
      %v592 = vmax.f32 %v557, 0.0
      %v593 = vmax.f32 %v560, 0.0
      %v594 = vmax.f32 %v562, 0.0
      %v595 = vmax.f32 %v565, 0.0
      %v596 = vmax.f32 %v567, 0.0
      %v597 = vmax.f32 %v570, 0.0
      %v598 = vmax.f32 %v572, 0.0
      %v599 = vmax.f32 %v575, 0.0
      %v600 = vmax.f32 %v577, 0.0
      %v601 = vmax.f32 %v580, 0.0
      %v602 = vmax.f32 %v582, 0.0
      %v603 = vmax.f32 %v585, 0.0
      %v604 = vmax.f32 %v587, 0.0
      %v605 = vld [vmem:[%s5] sm:$0xff]
      %v606 = vld [vmem:[%s5 + $0x8] sm:$0xff]
      %v607 = vld [vmem:[%s5 + $0x10] sm:$0xff]
      %v608 = vld [vmem:[%s5 + $0x18] sm:$0xff]
      %v609 = vld [vmem:[%s5 + $0x20] sm:$0xff]
      %v610 = vld [vmem:[%s5 + $0x28] sm:$0xff]
      %v611 = vld [vmem:[%s5 + $0x30] sm:$0xff]
      %v612 = vld [vmem:[%s5 + $0x38] sm:$0xff]
      %v613 = vld [vmem:[%s5 + $0x40] sm:$0xff]
      %v614 = vld [vmem:[%s5 + $0x48] sm:$0xff]
      %v615 = vld [vmem:[%s5 + $0x50] sm:$0xff]
      %v616 = vld [vmem:[%s5 + $0x58] sm:$0xff]
      %v617 = vld [vmem:[%s5 + $0x60] sm:$0xff]
      %v618 = vld [vmem:[%s5 + $0x68] sm:$0xff]
      %v619 = vld [vmem:[%s5 + $0x70] sm:$0xff]
      %v620 = vld [vmem:[%s5 + $0x78] sm:$0xff]
      %v621 = vld [vmem:[#allocation2] sm:$0x1]
      %622 = vxpose.xlu0.b32.start [1/16] %v589, 128
      %623 = vxpose.xlu0.b32.cont [2/16] %v590, 128
      %624 = vxpose.xlu0.b32.cont [3/16] %v591, 128
      %625 = vxpose.xlu0.b32.cont [4/16] %v592, 128
      %626 = vxpose.xlu0.b32.cont [5/16] %v593, 128
      %627 = vxpose.xlu0.b32.cont [6/16] %v594, 128
      %628 = vxpose.xlu0.b32.cont [7/16] %v595, 128
      %629 = vxpose.xlu0.b32.cont [8/16] %v596, 128
      %630 = vxpose.xlu0.b32.cont [9/16] %v597, 128
      %631 = vxpose.xlu0.b32.cont [10/16] %v598, 128
      %632 = vxpose.xlu0.b32.cont [11/16] %v599, 128
      %633 = vxpose.xlu0.b32.cont [12/16] %v600, 128
      %634 = vxpose.xlu0.b32.cont [13/16] %v601, 128
      %635 = vxpose.xlu0.b32.cont [14/16] %v602, 128
      %636 = vxpose.xlu0.b32.cont [15/16] %v603, 128
      %637 = vxpose.xlu0.b32.end [16/16] %v604, 128
      %v638 = vpop.trf.xlu0
      %v639 = vpop.trf.xlu0
      %v640 = vpop.trf.xlu0
      %v641 = vpop.trf.xlu0
      %v642 = vpop.trf.xlu0
      %v643 = vpop.trf.xlu0
      %v644 = vpop.trf.xlu0
      %v645 = vpop.trf.xlu0
      %v646 = vpop.trf.xlu0
      %v647 = vpop.trf.xlu0
      %v648 = vpop.trf.xlu0
      %v649 = vpop.trf.xlu0
      %v650 = vpop.trf.xlu0
      %v651 = vpop.trf.xlu0
      %v652 = vpop.trf.xlu0
      %v653 = vpop.trf.xlu0
      %655 = vset.pattern.permute.xlu0 0
      %656 = vperm.xlu0 %655, %v605
      %v657 = vpop.permute.xlu0 %656
      %660 = vset.pattern.permute.xlu0 0
      %661 = vperm.xlu0 %660, %v606
      %v662 = vpop.permute.xlu0 %661
      %665 = vset.pattern.permute.xlu0 0
      %666 = vperm.xlu0 %665, %v607
      %v667 = vpop.permute.xlu0 %666
      %670 = vset.pattern.permute.xlu0 0
      %671 = vperm.xlu0 %670, %v608
      %v672 = vpop.permute.xlu0 %671
      %675 = vset.pattern.permute.xlu0 0
      %676 = vperm.xlu0 %675, %v609
      %v677 = vpop.permute.xlu0 %676
      %680 = vset.pattern.permute.xlu0 0
      %681 = vperm.xlu0 %680, %v610
      %v682 = vpop.permute.xlu0 %681
      %685 = vset.pattern.permute.xlu0 0
      %686 = vperm.xlu0 %685, %v611
      %v687 = vpop.permute.xlu0 %686
      %690 = vset.pattern.permute.xlu0 0
      %691 = vperm.xlu0 %690, %v612
      %v692 = vpop.permute.xlu0 %691
      %695 = vset.pattern.permute.xlu0 0
      %696 = vperm.xlu0 %695, %v613
      %v697 = vpop.permute.xlu0 %696
      %700 = vset.pattern.permute.xlu0 0
      %701 = vperm.xlu0 %700, %v614
      %v702 = vpop.permute.xlu0 %701
      %705 = vset.pattern.permute.xlu0 0
      %706 = vperm.xlu0 %705, %v615
      %v707 = vpop.permute.xlu0 %706
      %710 = vset.pattern.permute.xlu0 0
      %711 = vperm.xlu0 %710, %v616
      %v712 = vpop.permute.xlu0 %711
      %715 = vset.pattern.permute.xlu0 0
      %716 = vperm.xlu0 %715, %v617
      %v717 = vpop.permute.xlu0 %716
      %720 = vset.pattern.permute.xlu0 0
      %721 = vperm.xlu0 %720, %v618
      %v722 = vpop.permute.xlu0 %721
      %725 = vset.pattern.permute.xlu0 0
      %726 = vperm.xlu0 %725, %v619
      %v727 = vpop.permute.xlu0 %726
      %730 = vset.pattern.permute.xlu0 0
      %731 = vperm.xlu0 %730, %v620
      %v732 = vpop.permute.xlu0 %731
      %v734 = vmul.f32 %v638, %v657
      %v735 = vmul.f32 %v639, %v662
      %v736 = vmul.f32 %v640, %v667
      %v737 = vmul.f32 %v641, %v672
      %v738 = vmul.f32 %v642, %v677
      %v739 = vmul.f32 %v643, %v682
      %v740 = vmul.f32 %v644, %v687
      %v741 = vmul.f32 %v645, %v692
      %v742 = vmul.f32 %v646, %v697
      %v743 = vmul.f32 %v647, %v702
      %v744 = vmul.f32 %v648, %v707
      %v745 = vmul.f32 %v649, %v712
      %v746 = vmul.f32 %v650, %v717
      %v747 = vmul.f32 %v651, %v722
      %v748 = vmul.f32 %v652, %v727
      %v749 = vmul.f32 %v653, %v732
      %v750 = vadd.f32 %v734, %v735
      %v751 = vadd.f32 %v750, %v736
      %v752 = vadd.f32 %v751, %v737
      %v753 = vadd.f32 %v752, %v738
      %v754 = vadd.f32 %v753, %v739
      %v755 = vadd.f32 %v754, %v740
      %v756 = vadd.f32 %v755, %v741
      %v757 = vadd.f32 %v756, %v742
      %v758 = vadd.f32 %v757, %v743
      %v759 = vadd.f32 %v758, %v744
      %v760 = vadd.f32 %v759, %v745
      %v761 = vadd.f32 %v760, %v746
      %v762 = vadd.f32 %v761, %v747
      %v763 = vadd.f32 %v762, %v748
      %v764 = vadd.f32 %v763, %v749
      %v765 = vrot.slane %v764, 4
      %v766 = vadd.f32 %v764, %v765
      %v767 = vrot.slane %v766, 2
      %v768 = vadd.f32 %v766, %v767
      %v769 = vrot.slane %v768, 1
      %v770 = vadd.f32 %v768, %v769
      %772 = vset.pattern.permute.xlu0 0
      %773 = vperm.xlu0 %772, %v621
      %v774 = vpop.permute.xlu0 %773
      %v776 = vperm.slane %v774, 0
      %v777 = vadd.f32 %v770, %v776
      %778 = vst [vmem:[%s280] sm:$0xff] %v777
      %p779 = scmp.lt.s32.totalorder %s20, 1
      %s780 = scalar_select %p779, %s20, 1
      %s781 = smul.addr %s780, 8
      %s782 = scalar_lea.vmem %s7, %s781
      // Predicated region
      $region49: #{reward_model_forward.1} parent=47 // pred_check
        %p783 = pneg %p190
      $region50: #{reward_model_forward.1} parent=47 // pred_check_branch
        %785 = sbr.rel (%p783) target = $region52
      $region51: #{reward_model_forward.1} parent=47 // pred_region
        _
      $region52: #{reward_model_forward.1} parent=47 // pred_fallthru
        _
    $region48: #{reward_model_forward.1} parent=5 // pred_fallthru
      _
    %p786 = scmp.le.s32.totalorder 2, %s15
    // Predicated region
    $region53: #{reward_model_forward.1} parent=5 // pred_check
      %p787 = pneg %p786
    $region54: #{reward_model_forward.1} parent=5 // pred_check_branch
      %789 = sbr.rel (%p787) target = $region56
    $region55: #{reward_model_forward.1} parent=5 // pred_region
      %s790 = ssub.s32 %s15, 2
      // Predicated region
      $region57: #{reward_model_forward.1} parent=55 // pred_check
        %p791 = pneg %p196
      $region58: #{reward_model_forward.1} parent=55 // pred_check_branch
        %793 = sbr.rel (%p791) target = $region60
      $region59: #{reward_model_forward.1} parent=55 // pred_region
        %p794 = scmp.lt.s32.totalorder %s21, 1
        %s795 = scalar_select %p794, %s21, 1
        %s796 = smul.addr %s795, 8
        %s797 = scalar_lea.vmem %s7, %s796
      $region60: #{reward_model_forward.1} parent=55 // pred_fallthru
        _
    $region56: #{reward_model_forward.1} parent=5 // pred_fallthru
      _
  $region6: #{reward_model_forward.1} parent=0 // loop_footer
    %s19 = sadd.s32 1, %s15
  $region7: #{reward_model_forward.1} parent=0 // loop_footer_branch
    %14 = sbr.rel target = $region3
  $region8: #{reward_model_forward.1} parent=0 // loop_exit
    _

</llo_original>
